<compile_context>
chip_gen: v5e
topology: v5e:2x2
jax: 0.10.0
libtpu: 0.0.40
codegen_flags: <defaults>
</compile_context>

<pallas_src>
import functools

import jax
import jax.numpy as jnp
from jax import lax
from jax.experimental import pallas as pl
from jax.experimental.pallas import tpu as pltpu

BN_EPS = 1e-5
DROPOUT_P = 0.1


# ---------------------------------------------------------------------------
# Pass 1: h_pre = x @ W1 + b1  (bf16 operands, f32 accumulation) and per-tile
#         partial BatchNorm statistics [sum, sum of squares] -> one-pass var.
# ---------------------------------------------------------------------------
def encoder_stats_kernel(x_ref, w1_ref, b1_ref, h_ref, psum_ref):
    h = jnp.dot(x_ref[...], w1_ref[...],
                preferred_element_type=jnp.float32) + b1_ref[...]
    h_ref[...] = h
    s = jnp.sum(h, axis=0, keepdims=True)        # [1, H]
    ss = jnp.sum(h * h, axis=0, keepdims=True)   # [1, H]
    psum_ref[...] = jnp.concatenate([s, ss], axis=0)[None]   # [1, 2, H]


# ---------------------------------------------------------------------------
# Pass 2: BN (single scale/shift, dropout scale folded in), ReLU, dropout mask,
#         fused mu||logvar head matmul, reparameterization.
#         Emits one lane-dense [tile, 3L] slab: z || mu || logvar.
# ---------------------------------------------------------------------------
def encoder_finalize_kernel(h_ref, psum_ref, gamma_ref, beta_ref,
                            wh_ref, bh_ref, noise_ref, mask_ref, out_ref, *,
                            batch: int, latent_dim: int):
    L = latent_dim
    inv_b = 1.0 / batch
    keep_scale = 1.0 / (1.0 - DROPOUT_P)

    # ---- BatchNorm batch stats, one pass: var = E[h^2] - E[h]^2 (biased) ----
    sums = jnp.sum(psum_ref[...], axis=0)            # [2, H]
    mean = sums[0:1, :] * inv_b                      # [1, H]
    ex2 = sums[1:2, :] * inv_b                       # [1, H]
    var = ex2 - mean * mean
    g_inv_std = gamma_ref[...] * lax.rsqrt(var + BN_EPS)
    # fold dropout's 1/(1-p) into both scale and shift: ReLU(c*y) = c*ReLU(y), c > 0
    scale = g_inv_std * keep_scale                   # [1, H]
    shift = (beta_ref[...] - mean * g_inv_std) * keep_scale

    # ---- BN + ReLU + dropout keep-mask (VPU passes over [tile, H], all f32) ----
    h = jnp.maximum(h_ref[...] * scale + shift, 0.0) * mask_ref[...]

    # ---- Fused heads: single MXU call for [mu | logvar] ----
    heads = jnp.dot(h.astype(jnp.bfloat16), wh_ref[...],
                    preferred_element_type=jnp.float32) + bh_ref[...]
    mu = heads[:, :L]
    logvar = heads[:, L:]

    # ---- Reparameterization: z = mu + eps * exp(0.5 * logvar) ----
    std = jnp.exp(0.5 * logvar)
    z = mu + noise_ref[...] * std

    out_ref[...] = jnp.concatenate([z, mu, logvar], axis=-1)   # [tile, 3L]


@functools.partial(jax.jit, static_argnames=("batch_tile",))
def variational_encoder_forward(x, params, noise, keep_mask, batch_tile=None):
    """x: [B, input_dim] f32 -> (z, mu, logvar) each [B, latent_dim] f32."""
    B, input_dim = x.shape
    hidden_dim = params["w1"].shape[1]
    latent_dim = params["w_mu"].shape[1]
    L = latent_dim

    if batch_tile is None:
        batch_tile = B
    assert B % batch_tile == 0, "batch must be divisible by batch_tile"
    nb = B // batch_tile

    # ---- operand prep (plain JAX glue; matmul operands in bf16) ----
    x_bf = x.astype(jnp.bfloat16)
    w1 = params["w1"].astype(jnp.bfloat16)
    b1 = params["b1"]
    gamma, beta = params["gamma"], params["beta"]
    w_heads = jnp.concatenate([params["w_mu"], params["w_lv"]],
                              axis=1).astype(jnp.bfloat16)       # [H, 2L]
    b_heads = jnp.concatenate([params["b_mu"], params["b_lv"]], axis=1)  # [1, 2L]

    # ----------------- pass 1: linear + partial BN stats -----------------
    h_pre, psums = pl.pallas_call(
        encoder_stats_kernel,
        out_shape=(
            jax.ShapeDtypeStruct((B, hidden_dim), jnp.float32),
            jax.ShapeDtypeStruct((nb, 2, hidden_dim), jnp.float32),
        ),
        grid_spec=pltpu.PrefetchScalarGridSpec(
            num_scalar_prefetch=0,
            grid=(nb,),
            in_specs=[
                pl.BlockSpec((batch_tile, input_dim), lambda i: (i, 0)),
                pl.BlockSpec((input_dim, hidden_dim), lambda i: (0, 0)),
                pl.BlockSpec((1, hidden_dim), lambda i: (0, 0)),
            ],
            out_specs=(
                pl.BlockSpec((batch_tile, hidden_dim), lambda i: (i, 0)),
                pl.BlockSpec((1, 2, hidden_dim), lambda i: (i, 0, 0)),
            ),
        ),
        compiler_params=pltpu.CompilerParams(
            dimension_semantics=("parallel",)),
    )(x_bf, w1, b1)

    # ------- pass 2: BN/ReLU/dropout + fused heads + reparameterization -------
    kernel2 = functools.partial(encoder_finalize_kernel,
                                batch=B, latent_dim=L)
    packed = pl.pallas_call(
        kernel2,
        out_shape=jax.ShapeDtypeStruct((B, 3 * L), jnp.float32),
        grid_spec=pltpu.PrefetchScalarGridSpec(
            num_scalar_prefetch=0,
            grid=(nb,),
            in_specs=[
                pl.BlockSpec((batch_tile, hidden_dim), lambda i: (i, 0)),
                pl.BlockSpec((nb, 2, hidden_dim), lambda i: (0, 0, 0)),
                pl.BlockSpec((1, hidden_dim), lambda i: (0, 0)),
                pl.BlockSpec((1, hidden_dim), lambda i: (0, 0)),
                pl.BlockSpec((hidden_dim, 2 * L), lambda i: (0, 0)),
                pl.BlockSpec((1, 2 * L), lambda i: (0, 0)),
                pl.BlockSpec((batch_tile, L), lambda i: (i, 0)),
                pl.BlockSpec((batch_tile, hidden_dim), lambda i: (i, 0)),
            ],
            out_specs=pl.BlockSpec((batch_tile, 3 * L), lambda i: (i, 0)),
        ),
        compiler_params=pltpu.CompilerParams(
            dimension_semantics=("parallel",)),
        # For large H / B on v6e, raise vmem_limit_bytes; on v7x (64 MiB VMEM)
        # shrink batch_tile instead.
    )(h_pre, psums, gamma, beta, w_heads, b_heads, noise, keep_mask)

    z = packed[:, :L]
    mu = packed[:, L:2 * L]
    logvar = packed[:, 2 * L:]
    return z, mu, logvar


def init_params(key, input_dim, latent_dim, hidden_dim=None):
    """Deterministic PyTorch-style (uniform +-1/sqrt(fan_in)) initialization."""
    if hidden_dim is None:
        hidden_dim = input_dim
    k1, k2, k3, k4, k5, k6 = jax.random.split(key, 6)

    def linear(kw, kb, fan_in, fan_out):
        bound = 1.0 / jnp.sqrt(fan_in)
        # stored transposed: [in, out]
        w = jax.random.uniform(kw, (fan_in, fan_out), jnp.float32, -bound, bound)
        b = jax.random.uniform(kb, (1, fan_out), jnp.float32, -bound, bound)
        return w, b

    w1, b1 = linear(k1, k2, input_dim, hidden_dim)
    w_mu, b_mu = linear(k3, k4, hidden_dim, latent_dim)
    w_lv, b_lv = linear(k5, k6, hidden_dim, latent_dim)
    return {
        "w1": w1, "b1": b1,
        "gamma": jnp.ones((1, hidden_dim), jnp.float32),   # BatchNorm1d weight
        "beta": jnp.zeros((1, hidden_dim), jnp.float32),   # BatchNorm1d bias
        "w_mu": w_mu, "b_mu": b_mu,
        "w_lv": w_lv, "b_lv": b_lv,
    }


if __name__ == "__main__":
    B, INPUT_DIM, HIDDEN_DIM, LATENT_DIM = 32, 32, 64, 16
    BATCH_TILE = 16    # 2 grid tiles -> exercises the batch grid / pipelining

    root = jax.random.PRNGKey(0)
    k_params, k_x, k_noise, k_drop = jax.random.split(root, 4)

    params = init_params(k_params, INPUT_DIM, LATENT_DIM, HIDDEN_DIM)
    x = jax.random.normal(k_x, (B, INPUT_DIM), jnp.float32)

    # eps ~ N(0,1) for the reparameterization trick.
    noise = jax.random.normal(k_noise, (B, LATENT_DIM), jnp.float32)
    # Dropout keep-mask {0,1}; the 1/(1-p) inverted-dropout scale is folded into the
    # in-kernel BN scale/shift.
    # TODO(synk): on real TPU this mask could be generated in-kernel with
    #   pltpu.prng_random_bits, but that primitive has no CPU/interpret lowering,
    #   so it is precomputed here for portability.
    keep_mask = jax.random.bernoulli(
        k_drop, 1.0 - DROPOUT_P, (B, HIDDEN_DIM)).astype(jnp.float32)

    z, mu, logvar = variational_encoder_forward(
        x, params, noise, keep_mask, batch_tile=BATCH_TILE)
    jax.block_until_ready((z, mu, logvar))

    assert z.shape == (B, LATENT_DIM)
    assert mu.shape == (B, LATENT_DIM)
    assert logvar.shape == (B, LATENT_DIM)
    assert bool(jnp.all(jnp.isfinite(z)))
    assert bool(jnp.all(jnp.isfinite(mu)))
    assert bool(jnp.all(jnp.isfinite(logvar)))
    print("KERNEL_OK")
</pallas_src>

<mosaic_0001>
module attributes {stable_mosaic.version = 11 : i64} {
  func.func @encoder_stats_kernel(%arg0: i32, %arg1: memref<16x32xbf16, #tpu.memory_space<vmem>>, %arg2: memref<32x64xbf16, #tpu.memory_space<vmem>>, %arg3: memref<1x64xf32, #tpu.memory_space<vmem>>, %arg4: memref<16x64xf32, #tpu.memory_space<vmem>>, %arg5: memref<1x2x64xf32, #tpu.memory_space<vmem>>) attributes {dimension_semantics = [#tpu.dimension_semantics<parallel>], iteration_bounds = array<i64: 2>, scalar_prefetch = 0 : i64, scratch_operands = 0 : i64, tpu.core_type = #tpu.core_type<tc>, window_params = [{transform_indices = @transform_0, window_bounds = array<i64: 16, 32>}, {pipeline_mode = #tpu.pipeline_mode<synchronous>, transform_indices = @transform_1, window_bounds = array<i64: 32, 64>}, {pipeline_mode = #tpu.pipeline_mode<synchronous>, transform_indices = @transform_2, window_bounds = array<i64: 1, 64>}, {transform_indices = @transform_3, window_bounds = array<i64: 16, 64>}, {transform_indices = @transform_4, window_bounds = array<i64: 1, 2, 64>}]} {
    %c0 = arith.constant 0 : index
    %c0_0 = arith.constant 0 : index
    %0 = vector.load %arg1[%c0, %c0_0] : memref<16x32xbf16, #tpu.memory_space<vmem>>, vector<16x32xbf16>
    %c0_1 = arith.constant 0 : index
    %c0_2 = arith.constant 0 : index
    %1 = vector.load %arg2[%c0_1, %c0_2] : memref<32x64xbf16, #tpu.memory_space<vmem>>, vector<32x64xbf16>
    %cst = arith.constant dense<0.000000e+00> : vector<16x64xf32>
    %2 = tpu.matmul %0, %1, %cst {dimension_numbers = #tpu.dot_dimension_numbers<[1], [0], [0], [1], [0, 0, 1, 1], [], []>} : vector<16x32xbf16>, vector<32x64xbf16>, vector<16x64xf32> -> vector<16x64xf32>
    %c0_3 = arith.constant 0 : index
    %c0_4 = arith.constant 0 : index
    %3 = vector.load %arg3[%c0_3, %c0_4] : memref<1x64xf32, #tpu.memory_space<vmem>>, vector<1x64xf32>
    %4 = vector.broadcast %3 : vector<1x64xf32> to vector<16x64xf32>
    %5 = arith.addf %2, %4 : vector<16x64xf32>
    %c0_5 = arith.constant 0 : index
    %c0_6 = arith.constant 0 : index
    %6 = vector.load %arg4[%c0_5, %c0_6] : memref<16x64xf32, #tpu.memory_space<vmem>>, vector<16x64xf32>
    tpu.vector_store %arg4[%c0_5, %c0_6], %5 {strides = array<i32>} : memref<16x64xf32, #tpu.memory_space<vmem>>, vector<16x64xf32>,
    %cst_7 = arith.constant dense<0.000000e+00> : vector<64xf32>
    %7 = vector.multi_reduction <add>, %5, %cst_7 [0] : vector<16x64xf32> to vector<64xf32>
    %8 = vector.shape_cast %7 : vector<64xf32> to vector<1x64xf32>
    %9 = arith.mulf %5, %5 : vector<16x64xf32>
    %cst_8 = arith.constant dense<0.000000e+00> : vector<64xf32>
    %10 = vector.multi_reduction <add>, %9, %cst_8 [0] : vector<16x64xf32> to vector<64xf32>
    %11 = vector.shape_cast %10 : vector<64xf32> to vector<1x64xf32>
    %12 = tpu.concatenate %8, %11 in 0 : vector<1x64xf32>, vector<1x64xf32> -> vector<2x64xf32>
    %13 = vector.shape_cast %12 : vector<2x64xf32> to vector<1x2x64xf32>
    %c0_9 = arith.constant 0 : index
    %c0_10 = arith.constant 0 : index
    %c0_11 = arith.constant 0 : index
    %14 = vector.load %arg5[%c0_9, %c0_10, %c0_11] : memref<1x2x64xf32, #tpu.memory_space<vmem>>, vector<1x2x64xf32>
    tpu.vector_store %arg5[%c0_9, %c0_10, %c0_11], %13 {strides = array<i32>} : memref<1x2x64xf32, #tpu.memory_space<vmem>>, vector<1x2x64xf32>,
    return
  }
  func.func @transform_0(%arg0: i32) -> (i32, i32) {
    %c0_i32 = arith.constant 0 : i32
    %c0_i32_0 = arith.constant 0 : i32
    return %arg0, %c0_i32 : i32, i32
  }
  func.func @transform_1(%arg0: i32) -> (i32, i32) {
    %c0_i32 = arith.constant 0 : i32
    %c0_i32_0 = arith.constant 0 : i32
    %c0_i32_1 = arith.constant 0 : i32
    return %c0_i32, %c0_i32_0 : i32, i32
  }
  func.func @transform_2(%arg0: i32) -> (i32, i32) {
    %c0_i32 = arith.constant 0 : i32
    %c0_i32_0 = arith.constant 0 : i32
    %c0_i32_1 = arith.constant 0 : i32
    return %c0_i32, %c0_i32_0 : i32, i32
  }
  func.func @transform_3(%arg0: i32) -> (i32, i32) {
    %c0_i32 = arith.constant 0 : i32
    %c0_i32_0 = arith.constant 0 : i32
    return %arg0, %c0_i32 : i32, i32
  }
  func.func @transform_4(%arg0: i32) -> (i32, i32, i32) {
    %c0_i32 = arith.constant 0 : i32
    %c0_i32_0 = arith.constant 0 : i32
    %c0_i32_1 = arith.constant 0 : i32
    return %arg0, %c0_i32, %c0_i32_0 : i32, i32, i32
  }
}

module attributes {stable_mosaic.version = 11 : i64} {
  func.func @encoder_finalize_kernel(%arg0: i32, %arg1: memref<16x64xf32, #tpu.memory_space<vmem>>, %arg2: memref<2x2x64xf32, #tpu.memory_space<vmem>>, %arg3: memref<1x64xf32, #tpu.memory_space<vmem>>, %arg4: memref<1x64xf32, #tpu.memory_space<vmem>>, %arg5: memref<64x32xbf16, #tpu.memory_space<vmem>>, %arg6: memref<1x32xf32, #tpu.memory_space<vmem>>, %arg7: memref<16x16xf32, #tpu.memory_space<vmem>>, %arg8: memref<16x64xf32, #tpu.memory_space<vmem>>, %arg9: memref<16x48xf32, #tpu.memory_space<vmem>>) attributes {dimension_semantics = [#tpu.dimension_semantics<parallel>], iteration_bounds = array<i64: 2>, scalar_prefetch = 0 : i64, scratch_operands = 0 : i64, tpu.core_type = #tpu.core_type<tc>, window_params = [{transform_indices = @transform_0, window_bounds = array<i64: 16, 64>}, {pipeline_mode = #tpu.pipeline_mode<synchronous>, transform_indices = @transform_1, window_bounds = array<i64: 2, 2, 64>}, {pipeline_mode = #tpu.pipeline_mode<synchronous>, transform_indices = @transform_2, window_bounds = array<i64: 1, 64>}, {pipeline_mode = #tpu.pipeline_mode<synchronous>, transform_indices = @transform_3, window_bounds = array<i64: 1, 64>}, {pipeline_mode = #tpu.pipeline_mode<synchronous>, transform_indices = @transform_4, window_bounds = array<i64: 64, 32>}, {pipeline_mode = #tpu.pipeline_mode<synchronous>, transform_indices = @transform_5, window_bounds = array<i64: 1, 32>}, {transform_indices = @transform_6, window_bounds = array<i64: 16, 16>}, {transform_indices = @transform_7, window_bounds = array<i64: 16, 64>}, {transform_indices = @transform_8, window_bounds = array<i64: 16, 48>}]} {
    %c0 = arith.constant 0 : index
    %c0_0 = arith.constant 0 : index
    %c0_1 = arith.constant 0 : index
    %0 = vector.load %arg2[%c0, %c0_0, %c0_1] : memref<2x2x64xf32, #tpu.memory_space<vmem>>, vector<2x2x64xf32>
    %cst = arith.constant dense<0.000000e+00> : vector<2x64xf32>
    %1 = vector.multi_reduction <add>, %0, %cst [0] : vector<2x2x64xf32> to vector<2x64xf32>
    %2 = vector.extract_strided_slice %1 {offsets = [0, 0], sizes = [1, 64], strides = [1, 1]} : vector<2x64xf32> to vector<1x64xf32>
    %cst_2 = arith.constant 3.125000e-02 : f32
    %3 = vector.broadcast %cst_2 : f32 to vector<1x64xf32>
    %4 = arith.mulf %2, %3 : vector<1x64xf32>
    %5 = vector.extract_strided_slice %1 {offsets = [1, 0], sizes = [1, 64], strides = [1, 1]} : vector<2x64xf32> to vector<1x64xf32>
    %cst_3 = arith.constant 3.125000e-02 : f32
    %6 = vector.broadcast %cst_3 : f32 to vector<1x64xf32>
    %7 = arith.mulf %5, %6 : vector<1x64xf32>
    %8 = arith.mulf %4, %4 : vector<1x64xf32>
    %9 = arith.subf %7, %8 : vector<1x64xf32>
    %c0_4 = arith.constant 0 : index
    %c0_5 = arith.constant 0 : index
    %10 = vector.load %arg3[%c0_4, %c0_5] : memref<1x64xf32, #tpu.memory_space<vmem>>, vector<1x64xf32>
    %cst_6 = arith.constant 9.99999974E-6 : f32
    %11 = vector.broadcast %cst_6 : f32 to vector<1x64xf32>
    %12 = arith.addf %9, %11 : vector<1x64xf32>
    %13 = math.rsqrt %12 : vector<1x64xf32>
    %14 = arith.mulf %10, %13 : vector<1x64xf32>
    %cst_7 = arith.constant 1.11111116 : f32
    %15 = vector.broadcast %cst_7 : f32 to vector<1x64xf32>
    %16 = arith.mulf %14, %15 : vector<1x64xf32>
    %c0_8 = arith.constant 0 : index
    %c0_9 = arith.constant 0 : index
    %17 = vector.load %arg4[%c0_8, %c0_9] : memref<1x64xf32, #tpu.memory_space<vmem>>, vector<1x64xf32>
    %18 = arith.mulf %4, %14 : vector<1x64xf32>
    %19 = arith.subf %17, %18 : vector<1x64xf32>
    %cst_10 = arith.constant 1.11111116 : f32
    %20 = vector.broadcast %cst_10 : f32 to vector<1x64xf32>
    %21 = arith.mulf %19, %20 : vector<1x64xf32>
    %c0_11 = arith.constant 0 : index
    %c0_12 = arith.constant 0 : index
    %22 = vector.load %arg1[%c0_11, %c0_12] : memref<16x64xf32, #tpu.memory_space<vmem>>, vector<16x64xf32>
    %23 = vector.broadcast %16 : vector<1x64xf32> to vector<16x64xf32>
    %24 = arith.mulf %22, %23 : vector<16x64xf32>
    %25 = vector.broadcast %21 : vector<1x64xf32> to vector<16x64xf32>
    %26 = arith.addf %24, %25 : vector<16x64xf32>
    %cst_13 = arith.constant 0.000000e+00 : f32
    %27 = vector.broadcast %cst_13 : f32 to vector<16x64xf32>
    %28 = arith.maximumf %26, %27 : vector<16x64xf32>
    %c0_14 = arith.constant 0 : index
    %c0_15 = arith.constant 0 : index
    %29 = vector.load %arg8[%c0_14, %c0_15] : memref<16x64xf32, #tpu.memory_space<vmem>>, vector<16x64xf32>
    %30 = arith.mulf %28, %29 : vector<16x64xf32>
    %31 = arith.truncf %30 : vector<16x64xf32> to vector<16x64xbf16>
    %c0_16 = arith.constant 0 : index
    %c0_17 = arith.constant 0 : index
    %32 = vector.load %arg5[%c0_16, %c0_17] : memref<64x32xbf16, #tpu.memory_space<vmem>>, vector<64x32xbf16>
    %cst_18 = arith.constant dense<0.000000e+00> : vector<16x32xf32>
    %33 = tpu.matmul %31, %32, %cst_18 {dimension_numbers = #tpu.dot_dimension_numbers<[1], [0], [0], [1], [0, 0, 1, 1], [], []>} : vector<16x64xbf16>, vector<64x32xbf16>, vector<16x32xf32> -> vector<16x32xf32>
    %c0_19 = arith.constant 0 : index
    %c0_20 = arith.constant 0 : index
    %34 = vector.load %arg6[%c0_19, %c0_20] : memref<1x32xf32, #tpu.memory_space<vmem>>, vector<1x32xf32>
    %35 = vector.broadcast %34 : vector<1x32xf32> to vector<16x32xf32>
    %36 = arith.addf %33, %35 : vector<16x32xf32>
    %37 = vector.extract_strided_slice %36 {offsets = [0, 0], sizes = [16, 16], strides = [1, 1]} : vector<16x32xf32> to vector<16x16xf32>
    %38 = vector.extract_strided_slice %36 {offsets = [0, 16], sizes = [16, 16], strides = [1, 1]} : vector<16x32xf32> to vector<16x16xf32>
    %cst_21 = arith.constant 5.000000e-01 : f32
    %39 = vector.broadcast %cst_21 : f32 to vector<16x16xf32>
    %40 = arith.mulf %39, %38 : vector<16x16xf32>
    %41 = math.exp %40 : vector<16x16xf32>
    %c0_22 = arith.constant 0 : index
    %c0_23 = arith.constant 0 : index
    %42 = vector.load %arg7[%c0_22, %c0_23] : memref<16x16xf32, #tpu.memory_space<vmem>>, vector<16x16xf32>
    %43 = arith.mulf %42, %41 : vector<16x16xf32>
    %44 = arith.addf %37, %43 : vector<16x16xf32>
    %45 = tpu.concatenate %44, %37, %38 in 1 : vector<16x16xf32>, vector<16x16xf32>, vector<16x16xf32> -> vector<16x48xf32>
    %c0_24 = arith.constant 0 : index
    %c0_25 = arith.constant 0 : index
    %46 = vector.load %arg9[%c0_24, %c0_25] : memref<16x48xf32, #tpu.memory_space<vmem>>, vector<16x48xf32>
    tpu.vector_store %arg9[%c0_24, %c0_25], %45 {strides = array<i32>} : memref<16x48xf32, #tpu.memory_space<vmem>>, vector<16x48xf32>,
    return
  }
  func.func @transform_0(%arg0: i32) -> (i32, i32) {
    %c0_i32 = arith.constant 0 : i32
    %c0_i32_0 = arith.constant 0 : i32
    return %arg0, %c0_i32 : i32, i32
  }
  func.func @transform_1(%arg0: i32) -> (i32, i32, i32) {
    %c0_i32 = arith.constant 0 : i32
    %c0_i32_0 = arith.constant 0 : i32
    %c0_i32_1 = arith.constant 0 : i32
    %c0_i32_2 = arith.constant 0 : i32
    return %c0_i32, %c0_i32_0, %c0_i32_1 : i32, i32, i32
  }
  func.func @transform_2(%arg0: i32) -> (i32, i32) {
    %c0_i32 = arith.constant 0 : i32
    %c0_i32_0 = arith.constant 0 : i32
    %c0_i32_1 = arith.constant 0 : i32
    return %c0_i32, %c0_i32_0 : i32, i32
  }
  func.func @transform_3(%arg0: i32) -> (i32, i32) {
    %c0_i32 = arith.constant 0 : i32
    %c0_i32_0 = arith.constant 0 : i32
    %c0_i32_1 = arith.constant 0 : i32
    return %c0_i32, %c0_i32_0 : i32, i32
  }
  func.func @transform_4(%arg0: i32) -> (i32, i32) {
    %c0_i32 = arith.constant 0 : i32
    %c0_i32_0 = arith.constant 0 : i32
    %c0_i32_1 = arith.constant 0 : i32
    return %c0_i32, %c0_i32_0 : i32, i32
  }
  func.func @transform_5(%arg0: i32) -> (i32, i32) {
    %c0_i32 = arith.constant 0 : i32
    %c0_i32_0 = arith.constant 0 : i32
    %c0_i32_1 = arith.constant 0 : i32
    return %c0_i32, %c0_i32_0 : i32, i32
  }
  func.func @transform_6(%arg0: i32) -> (i32, i32) {
    %c0_i32 = arith.constant 0 : i32
    %c0_i32_0 = arith.constant 0 : i32
    return %arg0, %c0_i32 : i32, i32
  }
  func.func @transform_7(%arg0: i32) -> (i32, i32) {
    %c0_i32 = arith.constant 0 : i32
    %c0_i32_0 = arith.constant 0 : i32
    return %arg0, %c0_i32 : i32, i32
  }
  func.func @transform_8(%arg0: i32) -> (i32, i32) {
    %c0_i32 = arith.constant 0 : i32
    %c0_i32_0 = arith.constant 0 : i32
    return %arg0, %c0_i32 : i32, i32
  }
}

</mosaic_0001>

<llo_original>
// kernel: variational_encoder_forward.3
$region0: #{variational_encoder_forward.3}
  #allocation0 [shape = 'u32[]', space=smem, size = 0x4, offset = 0x4, fixed_abs, tag = 'smem constant byte address 0x4 - core index']
  #allocation1 [shape = 'u32[72,128]{1,0:T(1,128)}', space=vmem, size = 0x9000, scoped, tag = 'internal scratch']
  %s0 = inlined_call_operand.vmem [shape: f32[32,64], index: 0, kind: input, shape index: {}]
  %s1 = inlined_call_operand.vmem [shape: f32[2,2,64], index: 1, kind: input, shape index: {}]
  %s2 = inlined_call_operand.vmem [shape: f32[1,64], index: 2, kind: input, shape index: {}]
  %s3 = inlined_call_operand.vmem [shape: f32[1,64], index: 3, kind: input, shape index: {}]
  %s4 = inlined_call_operand.vmem [shape: bf16[64,32], index: 4, kind: input, shape index: {}]
  %s5 = inlined_call_operand.vmem [shape: f32[1,32], index: 5, kind: input, shape index: {}]
  %s6 = inlined_call_operand.vmem [shape: f32[32,16], index: 6, kind: input, shape index: {}]
  %s7 = inlined_call_operand.vmem [shape: f32[32,64], index: 7, kind: input, shape index: {}]
  %s8 = inlined_call_operand.vmem [shape: f32[32,48], index: 8, kind: output, shape index: {}]
  %s9 = sld [smem:[#allocation0]]
  $region65: #{variational_encoder_forward.3} parent=0
    _
  %s11 = ssub.s32 1, %s9
  %s12 = scalar_select 0, %s11, %s9
  loop: start=0, step=1, limit=4
  $region2: #{variational_encoder_forward.3} parent=0 // loop_pre_header
    _
  $region3: #{variational_encoder_forward.3} parent=0 // loop_header
    %s14 = sphi 0, %s18
    %p15 = scmp.ge.s32.totalorder %s14, 4
    %s24 = sphi 0, %s26
    %s27 = sphi 0, %s24
    %s28 = sphi 0, %s27
    %s44 = sphi 0, %s28
    %s48 = sphi 0, %s48
    %s50 = sphi 0, %s48
    %s51 = sphi 0, %s50
    %s65 = sphi 0, %s51
    %s69 = sphi 0, %s69
    %s71 = sphi 0, %s69
    %s72 = sphi 0, %s71
    %s86 = sphi 0, %s72
    %s90 = sphi 0, %s90
    %s92 = sphi 0, %s90
    %s93 = sphi 0, %s92
    %s107 = sphi 0, %s93
    %s111 = sphi 0, %s111
    %s113 = sphi 0, %s111
    %s114 = sphi 0, %s113
    %s128 = sphi 0, %s114
    %s132 = sphi 0, %s132
    %s134 = sphi 0, %s132
    %s135 = sphi 0, %s134
    %s149 = sphi 0, %s135
    %s155 = sphi 0, %s157
    %s158 = sphi 0, %s155
    %s159 = sphi 0, %s158
    %s175 = sphi 0, %s159
    %s181 = sphi 0, %s183
    %s184 = sphi 0, %s181
    %s185 = sphi 0, %s184
    %s201 = sphi 0, %s185
    %s207 = sphi 0, %s209
    %s210 = sphi 0, %s207
    %s211 = sphi 0, %s210
    %s227 = sphi 0, %s211
  $region4: #{variational_encoder_forward.3} parent=0 // loop_header_branch
    %17 = sbr.rel (%p15) target = $region8
  $region5: #{variational_encoder_forward.3} parent=0 // loop_body
    %s19 = ssub.s32 %s14, 1
    %s20 = ssub.s32 %s14, 2
    %s21 = sadd.s32 %s14, 1
    %s22 = ssub.s32 %s14, %s21
    %p23 = scmp.eq.s32.totalorder %s22, 0
    %s25 = sadd.s32 %s24, 1
    %s26 = scalar_select %p23, %s24, %s25
    %p29 = pneg %p23
    %p30 = scmp.eq.s32.totalorder %s14, 1
    %p31 = por %p29, %p30
    %p32 = scmp.ne.s32.totalorder %s24, %s27
    %p33 = scmp.eq.s32.totalorder %s14, 0
    %p34 = por %p32, %p33
    %p35 = scmp.ne.s32.totalorder %s24, %s27
    %p36 = scmp.eq.s32.totalorder %s19, 1
    %p37 = por %p35, %p36
    %p38 = scmp.ne.s32.totalorder %s27, %s28
    %p39 = scmp.eq.s32.totalorder %s19, 0
    %p40 = por %p38, %p39
    %p41 = scmp.ne.s32.totalorder %s27, %s28
    %p42 = scmp.eq.s32.totalorder %s20, 1
    %p43 = por %p41, %p42
    %p45 = scmp.ne.s32.totalorder %s28, %s44
    %p46 = scmp.eq.s32.totalorder %s20, 0
    %p47 = por %p45, %p46
    %s49 = sadd.s32 %s48, 1
    %p52 = scmp.eq.s32.totalorder %s14, 1
    %p53 = scmp.ne.s32.totalorder %s48, %s50
    %p54 = scmp.eq.s32.totalorder %s14, 0
    %p55 = por %p53, %p54
    %p56 = scmp.ne.s32.totalorder %s48, %s50
    %p57 = scmp.eq.s32.totalorder %s19, 1
    %p58 = por %p56, %p57
    %p59 = scmp.ne.s32.totalorder %s50, %s51
    %p60 = scmp.eq.s32.totalorder %s19, 0
    %p61 = por %p59, %p60
    %p62 = scmp.ne.s32.totalorder %s50, %s51
    %p63 = scmp.eq.s32.totalorder %s20, 1
    %p64 = por %p62, %p63
    %p66 = scmp.ne.s32.totalorder %s51, %s65
    %p67 = scmp.eq.s32.totalorder %s20, 0
    %p68 = por %p66, %p67
    %s70 = sadd.s32 %s69, 1
    %p73 = scmp.eq.s32.totalorder %s14, 1
    %p74 = scmp.ne.s32.totalorder %s69, %s71
    %p75 = scmp.eq.s32.totalorder %s14, 0
    %p76 = por %p74, %p75
    %p77 = scmp.ne.s32.totalorder %s69, %s71
    %p78 = scmp.eq.s32.totalorder %s19, 1
    %p79 = por %p77, %p78
    %p80 = scmp.ne.s32.totalorder %s71, %s72
    %p81 = scmp.eq.s32.totalorder %s19, 0
    %p82 = por %p80, %p81
    %p83 = scmp.ne.s32.totalorder %s71, %s72
    %p84 = scmp.eq.s32.totalorder %s20, 1
    %p85 = por %p83, %p84
    %p87 = scmp.ne.s32.totalorder %s72, %s86
    %p88 = scmp.eq.s32.totalorder %s20, 0
    %p89 = por %p87, %p88
    %s91 = sadd.s32 %s90, 1
    %p94 = scmp.eq.s32.totalorder %s14, 1
    %p95 = scmp.ne.s32.totalorder %s90, %s92
    %p96 = scmp.eq.s32.totalorder %s14, 0
    %p97 = por %p95, %p96
    %p98 = scmp.ne.s32.totalorder %s90, %s92
    %p99 = scmp.eq.s32.totalorder %s19, 1
    %p100 = por %p98, %p99
    %p101 = scmp.ne.s32.totalorder %s92, %s93
    %p102 = scmp.eq.s32.totalorder %s19, 0
    %p103 = por %p101, %p102
    %p104 = scmp.ne.s32.totalorder %s92, %s93
    %p105 = scmp.eq.s32.totalorder %s20, 1
    %p106 = por %p104, %p105
    %p108 = scmp.ne.s32.totalorder %s93, %s107
    %p109 = scmp.eq.s32.totalorder %s20, 0
    %p110 = por %p108, %p109
    %s112 = sadd.s32 %s111, 1
    %p115 = scmp.eq.s32.totalorder %s14, 1
    %p116 = scmp.ne.s32.totalorder %s111, %s113
    %p117 = scmp.eq.s32.totalorder %s14, 0
    %p118 = por %p116, %p117
    %p119 = scmp.ne.s32.totalorder %s111, %s113
    %p120 = scmp.eq.s32.totalorder %s19, 1
    %p121 = por %p119, %p120
    %p122 = scmp.ne.s32.totalorder %s113, %s114
    %p123 = scmp.eq.s32.totalorder %s19, 0
    %p124 = por %p122, %p123
    %p125 = scmp.ne.s32.totalorder %s113, %s114
    %p126 = scmp.eq.s32.totalorder %s20, 1
    %p127 = por %p125, %p126
    %p129 = scmp.ne.s32.totalorder %s114, %s128
    %p130 = scmp.eq.s32.totalorder %s20, 0
    %p131 = por %p129, %p130
    %s133 = sadd.s32 %s132, 1
    %p136 = scmp.eq.s32.totalorder %s14, 1
    %p137 = scmp.ne.s32.totalorder %s132, %s134
    %p138 = scmp.eq.s32.totalorder %s14, 0
    %p139 = por %p137, %p138
    %p140 = scmp.ne.s32.totalorder %s132, %s134
    %p141 = scmp.eq.s32.totalorder %s19, 1
    %p142 = por %p140, %p141
    %p143 = scmp.ne.s32.totalorder %s134, %s135
    %p144 = scmp.eq.s32.totalorder %s19, 0
    %p145 = por %p143, %p144
    %p146 = scmp.ne.s32.totalorder %s134, %s135
    %p147 = scmp.eq.s32.totalorder %s20, 1
    %p148 = por %p146, %p147
    %p150 = scmp.ne.s32.totalorder %s135, %s149
    %p151 = scmp.eq.s32.totalorder %s20, 0
    %p152 = por %p150, %p151
    %s153 = ssub.s32 %s14, %s21
    %p154 = scmp.eq.s32.totalorder %s153, 0
    %s156 = sadd.s32 %s155, 1
    %s157 = scalar_select %p154, %s155, %s156
    %p160 = pneg %p154
    %p161 = scmp.eq.s32.totalorder %s14, 1
    %p162 = por %p160, %p161
    %p163 = scmp.ne.s32.totalorder %s155, %s158
    %p164 = scmp.eq.s32.totalorder %s14, 0
    %p165 = por %p163, %p164
    %p166 = scmp.ne.s32.totalorder %s155, %s158
    %p167 = scmp.eq.s32.totalorder %s19, 1
    %p168 = por %p166, %p167
    %p169 = scmp.ne.s32.totalorder %s158, %s159
    %p170 = scmp.eq.s32.totalorder %s19, 0
    %p171 = por %p169, %p170
    %p172 = scmp.ne.s32.totalorder %s158, %s159
    %p173 = scmp.eq.s32.totalorder %s20, 1
    %p174 = por %p172, %p173
    %p176 = scmp.ne.s32.totalorder %s159, %s175
    %p177 = scmp.eq.s32.totalorder %s20, 0
    %p178 = por %p176, %p177
    %s179 = ssub.s32 %s14, %s21
    %p180 = scmp.eq.s32.totalorder %s179, 0
    %s182 = sadd.s32 %s181, 1
    %s183 = scalar_select %p180, %s181, %s182
    %p186 = pneg %p180
    %p187 = scmp.eq.s32.totalorder %s14, 1
    %p188 = por %p186, %p187
    %p189 = scmp.ne.s32.totalorder %s181, %s184
    %p190 = scmp.eq.s32.totalorder %s14, 0
    %p191 = por %p189, %p190
    %p192 = scmp.ne.s32.totalorder %s181, %s184
    %p193 = scmp.eq.s32.totalorder %s19, 1
    %p194 = por %p192, %p193
    %p195 = scmp.ne.s32.totalorder %s184, %s185
    %p196 = scmp.eq.s32.totalorder %s19, 0
    %p197 = por %p195, %p196
    %p198 = scmp.ne.s32.totalorder %s184, %s185
    %p199 = scmp.eq.s32.totalorder %s20, 1
    %p200 = por %p198, %p199
    %p202 = scmp.ne.s32.totalorder %s185, %s201
    %p203 = scmp.eq.s32.totalorder %s20, 0
    %p204 = por %p202, %p203
    %s205 = ssub.s32 %s14, %s21
    %p206 = scmp.eq.s32.totalorder %s205, 0
    %s208 = sadd.s32 %s207, 1
    %s209 = scalar_select %p206, %s207, %s208
    %p212 = pneg %p206
    %p213 = scmp.eq.s32.totalorder %s14, 1
    %p214 = por %p212, %p213
    %p215 = scmp.ne.s32.totalorder %s207, %s210
    %p216 = scmp.eq.s32.totalorder %s14, 0
    %p217 = por %p215, %p216
    %p218 = scmp.ne.s32.totalorder %s207, %s210
    %p219 = scmp.eq.s32.totalorder %s19, 1
    %p220 = por %p218, %p219
    %p221 = scmp.ne.s32.totalorder %s210, %s211
    %p222 = scmp.eq.s32.totalorder %s19, 0
    %p223 = por %p221, %p222
    %p224 = scmp.ne.s32.totalorder %s210, %s211
    %p225 = scmp.eq.s32.totalorder %s20, 1
    %p226 = por %p224, %p225
    %p228 = scmp.ne.s32.totalorder %s211, %s227
    %p229 = scmp.eq.s32.totalorder %s20, 0
    %p230 = por %p228, %p229
    %p231 = scmp.le.s32.totalorder 1, %s14
    %p232 = scmp.lt.s32.totalorder %s14, 3
    %p233 = pnand %p231, %p232
    %p234 = pneg %p233
    // Predicated region
    $region9: #{variational_encoder_forward.3} parent=5 // pred_check
      _
    $region10: #{variational_encoder_forward.3} parent=5 // pred_check_branch
      %236 = sbr.rel (%p233) target = $region12
    $region11: #{variational_encoder_forward.3} parent=5 // pred_region
      %s237 = ssub.s32 %s14, 1
      // Predicated region
      $region13: #{variational_encoder_forward.3} parent=11 // pred_check
        %p238 = pneg %p61
      $region14: #{variational_encoder_forward.3} parent=11 // pred_check_branch
        %240 = sbr.rel (%p238) target = $region16
      $region15: #{variational_encoder_forward.3} parent=11 // pred_region
        _
      $region16: #{variational_encoder_forward.3} parent=11 // pred_fallthru
        _
      // Predicated region
      $region17: #{variational_encoder_forward.3} parent=11 // pred_check
        %p241 = pneg %p82
      $region18: #{variational_encoder_forward.3} parent=11 // pred_check_branch
        %243 = sbr.rel (%p241) target = $region20
      $region19: #{variational_encoder_forward.3} parent=11 // pred_region
        _
      $region20: #{variational_encoder_forward.3} parent=11 // pred_fallthru
        _
      // Predicated region
      $region21: #{variational_encoder_forward.3} parent=11 // pred_check
        %p244 = pneg %p103
      $region22: #{variational_encoder_forward.3} parent=11 // pred_check_branch
        %246 = sbr.rel (%p244) target = $region24
      $region23: #{variational_encoder_forward.3} parent=11 // pred_region
        _
      $region24: #{variational_encoder_forward.3} parent=11 // pred_fallthru
        _
      // Predicated region
      $region25: #{variational_encoder_forward.3} parent=11 // pred_check
        %p247 = pneg %p124
      $region26: #{variational_encoder_forward.3} parent=11 // pred_check_branch
        %249 = sbr.rel (%p247) target = $region28
      $region27: #{variational_encoder_forward.3} parent=11 // pred_region
        _
      $region28: #{variational_encoder_forward.3} parent=11 // pred_fallthru
        _
      // Predicated region
      $region29: #{variational_encoder_forward.3} parent=11 // pred_check
        %p250 = pneg %p145
      $region30: #{variational_encoder_forward.3} parent=11 // pred_check_branch
        %252 = sbr.rel (%p250) target = $region32
      $region31: #{variational_encoder_forward.3} parent=11 // pred_region
        _
      $region32: #{variational_encoder_forward.3} parent=11 // pred_fallthru
        _
    $region12: #{variational_encoder_forward.3} parent=5 // pred_fallthru
      _
    %p253 = scmp.lt.s32.totalorder %s14, 2
    // Predicated region
    $region33: #{variational_encoder_forward.3} parent=5 // pred_check
      %p254 = pneg %p253
    $region34: #{variational_encoder_forward.3} parent=5 // pred_check_branch
      %256 = sbr.rel (%p254) target = $region36
    $region35: #{variational_encoder_forward.3} parent=5 // pred_region
      // Predicated region
      $region37: #{variational_encoder_forward.3} parent=35 // pred_check
        %p257 = pneg %p34
      $region38: #{variational_encoder_forward.3} parent=35 // pred_check_branch
        %259 = sbr.rel (%p257) target = $region40
      $region39: #{variational_encoder_forward.3} parent=35 // pred_region
        %s260 = smul.u32 2, %s14
        %p261 = scmp.lt.s32.totalorder %s260, 3
        %s262 = scalar_select %p261, %s260, 3
        %s263 = smul.addr %s262, 8
        %s264 = scalar_lea.vmem %s0, %s263
        %s265 = smul.u32 2, %s14
      $region40: #{variational_encoder_forward.3} parent=35 // pred_fallthru
        _
      // Predicated region
      $region41: #{variational_encoder_forward.3} parent=35 // pred_check
        %p266 = pneg %p165
      $region42: #{variational_encoder_forward.3} parent=35 // pred_check_branch
        %268 = sbr.rel (%p266) target = $region44
      $region43: #{variational_encoder_forward.3} parent=35 // pred_region
        %s269 = smul.u32 2, %s14
        %p270 = scmp.lt.s32.totalorder %s269, 3
        %s271 = scalar_select %p270, %s269, 3
        %s272 = smul.addr %s271, 8
        %s273 = scalar_lea.vmem %s6, %s272
        %s274 = smul.u32 2, %s14
      $region44: #{variational_encoder_forward.3} parent=35 // pred_fallthru
        _
      // Predicated region
      $region45: #{variational_encoder_forward.3} parent=35 // pred_check
        %p275 = pneg %p191
      $region46: #{variational_encoder_forward.3} parent=35 // pred_check_branch
        %277 = sbr.rel (%p275) target = $region48
      $region47: #{variational_encoder_forward.3} parent=35 // pred_region
        %s278 = smul.u32 2, %s14
        %p279 = scmp.lt.s32.totalorder %s278, 3
        %s280 = scalar_select %p279, %s278, 3
        %s281 = smul.addr %s280, 8
        %s282 = scalar_lea.vmem %s7, %s281
        %s283 = smul.u32 2, %s14
      $region48: #{variational_encoder_forward.3} parent=35 // pred_fallthru
        _
    $region36: #{variational_encoder_forward.3} parent=5 // pred_fallthru
      _
    %p284 = scmp.le.s32.totalorder 1, %s14
    %p285 = scmp.lt.s32.totalorder %s14, 3
    %p286 = pnand %p284, %p285
    %p287 = pneg %p286
    // Predicated region
    $region49: #{variational_encoder_forward.3} parent=5 // pred_check
      _
    $region50: #{variational_encoder_forward.3} parent=5 // pred_check_branch
      %289 = sbr.rel (%p286) target = $region52
    $region51: #{variational_encoder_forward.3} parent=5 // pred_region
      %s290 = ssub.s32 %s14, 1
      %s291 = smul.u32 2, %s19
      %p292 = scmp.lt.s32.totalorder %s291, 3
      %s293 = scalar_select %p292, %s291, 3
      %s294 = smul.addr %s293, 8
      %s295 = scalar_lea.vmem %s0, %s294
      %p296 = pneg %p40
      %p297 = pneg %p37
      %p298 = pneg %p61
      %p299 = pneg %p58
      %p300 = pneg %p82
      %p301 = pneg %p79
      %p302 = pneg %p103
      %p303 = pneg %p100
      %p304 = pneg %p124
      %p305 = pneg %p121
      %p306 = pneg %p145
      %p307 = pneg %p142
      %s308 = smul.u32 2, %s19
      %p309 = scmp.lt.s32.totalorder %s308, 3
      %s310 = scalar_select %p309, %s308, 3
      %s311 = smul.addr %s310, 8
      %s312 = scalar_lea.vmem %s6, %s311
      %p313 = pneg %p171
      %p314 = pneg %p168
      %s315 = smul.u32 2, %s19
      %p316 = scmp.lt.s32.totalorder %s315, 3
      %s317 = scalar_select %p316, %s315, 3
      %s318 = smul.addr %s317, 8
      %s319 = scalar_lea.vmem %s7, %s318
      %p320 = pneg %p197
      %p321 = pneg %p194
      %p322 = pneg %p223
      %p323 = pneg %p220
      %s324 = smul.u32 2, %s19
      %p325 = scmp.lt.s32.totalorder %s324, 3
      %s326 = scalar_select %p325, %s324, 3
      %s327 = smul.addr %s326, 8
      %s328 = scalar_lea.vmem %s8, %s327
      %s329 = smul.u32 2, %s19
      %p330 = scmp.lt.s32.totalorder %s329, 3
      %s331 = scalar_select %p330, %s329, 3
      %s332 = smul.addr %s331, 8
      %s333 = scalar_lea.vmem %s0, %s332
      %s334 = smul.u32 2, %s19
      %s335 = smul.u32 2, %s19
      %p336 = scmp.lt.s32.totalorder %s335, 3
      %s337 = scalar_select %p336, %s335, 3
      %s338 = smul.addr %s337, 8
      %s339 = scalar_lea.vmem %s6, %s338
      %s340 = smul.u32 2, %s19
      %s341 = smul.u32 2, %s19
      %p342 = scmp.lt.s32.totalorder %s341, 3
      %s343 = scalar_select %p342, %s341, 3
      %s344 = smul.addr %s343, 8
      %s345 = scalar_lea.vmem %s7, %s344
      %s346 = smul.u32 2, %s19
      %s347 = smul.u32 2, %s19
      %p348 = scmp.lt.s32.totalorder %s347, 3
      %s349 = scalar_select %p348, %s347, 3
      %s350 = smul.addr %s349, 8
      %s351 = scalar_lea.vmem %s8, %s350
      %s352 = smul.u32 2, %s19
      %v354 = vld [vmem:[%s1] sm:$0x3]
      %v355 = vld [vmem:[%s1 + $0x2] sm:$0x3]
      %vm356 = vcmask 517120
      %v357 = vsel %vm356, %v354, 0.0
      %v358 = vsel %vm356, %v355, 0.0
      %v359 = vadd.f32 %v357, %v358
      %v360 = vmul.f32 %v359, 0.03125
      %v361 = vmul.f32 %v360, %v360
      %v363 = vrot.slane %v361, 7
      %v365 = vsub.f32 %v360, %v363
      %v366 = vld [vmem:[%s2] sm:$0x1]
      %v367 = vadd.f32 %v365, 1e-05
      %v368 = vrsqrt.pop %v367
      %v369 = vmul.f32 %v368, %v367
      %v370 = vmul.f32 %v369, %v368
      %v371 = vmul.f32 0.5, %v370
      %v372 = vsub.f32 1.5, %v371
      %v373 = vmul.f32 %v368, %v372
      %vm374 = vweird.f32 %v367
      %vm375 = vweird.f32 %v368
      %vm376 = vmor %vm374, %vm375
      %v377 = vsel %vm376, %v368, %v373
      %379 = vst [vmem:[#allocation1] sm:$0xff] %v377
      %s380 = scalar_lea.vmem [#allocation1], 1
      %v381 = vld [vmem:[%s380] ss:$9 sm:$0xff]
      %v383 = vmul.f32 %v366, %v381
      %v384 = vmul.f32 %v383, 1.1111112
      %v385 = vld [vmem:[%s3] sm:$0x1]
      %v386 = vmul.f32 %v360, %v383
      %v387 = vsub.f32 %v385, %v386
      %v388 = vmul.f32 %v387, 1.1111112
      %v389 = vld [vmem:[%s333] sm:$0xff]
      %v390 = vld [vmem:[%s333 + $0x8] sm:$0xff]
      %v392 = vperm.slane %v384, 0
      %v394 = vmul.f32 %v389, %v392
      %v395 = vmul.f32 %v390, %v392
      %v397 = vperm.slane %v388, 0
      %v399 = vadd.f32 %v394, %v397
      %v400 = vadd.f32 %v395, %v397
      %v401 = vmax.f32 %v399, 0.0
      %v402 = vmax.f32 %v400, 0.0
      %v403 = vld [vmem:[%s345] sm:$0xff]
      %v404 = vld [vmem:[%s345 + $0x8] sm:$0xff]
      %v405 = vmul.f32 %v401, %v403
      %v406 = vmul.f32 %v402, %v404
      %v407 = vpack.c.bf16 %v406, %v405
      %v408 = vld [vmem:[%s4] sm:$0xf]
      %v409 = vld [vmem:[%s4 + $0x4] sm:$0xf]
      %v410 = vld [vmem:[%s4 + $0x8] sm:$0xf]
      %v411 = vld [vmem:[%s4 + $0xc] sm:$0xf]
      %v412 = vld [vmem:[%s4 + $0x10] sm:$0xf]
      %v413 = vld [vmem:[%s4 + $0x14] sm:$0xf]
      %v414 = vld [vmem:[%s4 + $0x18] sm:$0xf]
      %v415 = vld [vmem:[%s4 + $0x1c] sm:$0xf]
      %v416 = vld [vmem:[%s5] sm:$0x1]
      %v418 = vperm.slane %v416, 0
      %v428 = vunpack.c.l.b16 %v408
      %v429 = vunpack.c.l.b16 %v409
      %v430 = vunpack.c.l.b16 %v410
      %v431 = vunpack.c.l.b16 %v411
      %v432 = vunpack.c.l.b16 %v412
      %v433 = vunpack.c.l.b16 %v413
      %v434 = vunpack.c.l.b16 %v414
      %v435 = vunpack.c.l.b16 %v415
      %v436 = vpack.c.b16 %v429, %v428
      %v437 = vpack.c.b16 %v431, %v430
      %v438 = vpack.c.b16 %v433, %v432
      %v439 = vpack.c.b16 %v435, %v434
      %vm444 = vcmask 523264
      %v446 = vsel %vm444, %v407, 0
      %448 = vmatpush.bf16.msra.mxu0 0
      %449 = vmatpush.bf16.msra.mxu0 0
      %450 = vmatpush.bf16.msra.mxu0 0
      %451 = vmatpush.bf16.msra.mxu0 0
      %452 = vmatpush.bf16.msra.mxu0 %v439
      %453 = vmatpush.bf16.msra.mxu0 %v438
      %454 = vmatpush.bf16.msra.mxu0 %v437
      %455 = vmatpush.bf16.msra.mxu0 %v436
      %456 = vmatmul.bf16.gmra.mxu0 %v446
      %v457 = vpop.f32.mrf.mxu0
      %v458 = vadd.f32 %v418, %v457
      %v459 = vpop.f32.mrf.mxu0
      %v460 = vadd.f32 %v418, %v459
      %461 = vdwg.mxu0
      %v462 = vmul.f32 %v458, 0.5
      %v463 = vmul.f32 %v460, 0.5
      %v464 = vmul.f32 %v462, 1.442695
      %v465 = vpow.pop %v464
      %v466 = vmul.f32 %v463, 1.442695
      %v467 = vpow.pop %v466
      %v468 = vld [vmem:[%s339] sm:$0xff]
      %v469 = vld [vmem:[%s339 + $0x8] sm:$0xff]
      %472 = vrot.lane.b32.xlu0 %v465, 112
      %v473 = vpop.permute.xlu0 %472
      %474 = vrot.lane.b32.xlu0 %v467, 112
      %v475 = vpop.permute.xlu0 %474
      %v478 = vmul.f32 %v468, %v473
      %v479 = vmul.f32 %v469, %v475
      %v480 = vadd.f32 %v458, %v478
      %v481 = vadd.f32 %v460, %v479
      %484 = vrot.lane.b32.xlu0 %v458, 16
      %v485 = vpop.permute.xlu0 %484
      %486 = vrot.lane.b32.xlu0 %v460, 16
      %v487 = vpop.permute.xlu0 %486
      %vm490 = vcmask 130048
      %v491 = vsel %vm490, %v480, %v485
      %v492 = vsel %vm490, %v481, %v487
      %vm493 = vcmask 261120
      %v494 = vsel %vm493, %v491, %v485
      %v495 = vsel %vm493, %v492, %v487
      %vm496 = vcmask 392192
      %497 = vst.msk [vmem:[%s351] sm:$0xff] %vm496, %v494
      %498 = vst.msk [vmem:[%s351 + $0x8] sm:$0xff] %vm496, %v495
      %s499 = smul.u32 2, %s19
      %p500 = scmp.lt.s32.totalorder %s499, 3
      %s501 = scalar_select %p500, %s499, 3
      %s502 = smul.addr %s501, 8
      %s503 = scalar_lea.vmem %s8, %s502
      // Predicated region
      $region53: #{variational_encoder_forward.3} parent=51 // pred_check
        %p504 = pneg %p220
      $region54: #{variational_encoder_forward.3} parent=51 // pred_check_branch
        %506 = sbr.rel (%p504) target = $region56
      $region55: #{variational_encoder_forward.3} parent=51 // pred_region
        %s507 = smul.u32 2, %s19
      $region56: #{variational_encoder_forward.3} parent=51 // pred_fallthru
        _
    $region52: #{variational_encoder_forward.3} parent=5 // pred_fallthru
      _
    %p508 = scmp.le.s32.totalorder 2, %s14
    // Predicated region
    $region57: #{variational_encoder_forward.3} parent=5 // pred_check
      %p509 = pneg %p508
    $region58: #{variational_encoder_forward.3} parent=5 // pred_check_branch
      %511 = sbr.rel (%p509) target = $region60
    $region59: #{variational_encoder_forward.3} parent=5 // pred_region
      %s512 = ssub.s32 %s14, 2
      // Predicated region
      $region61: #{variational_encoder_forward.3} parent=59 // pred_check
        %p513 = pneg %p226
      $region62: #{variational_encoder_forward.3} parent=59 // pred_check_branch
        %515 = sbr.rel (%p513) target = $region64
      $region63: #{variational_encoder_forward.3} parent=59 // pred_region
        %s516 = smul.u32 2, %s20
        %p517 = scmp.lt.s32.totalorder %s516, 3
        %s518 = scalar_select %p517, %s516, 3
        %s519 = smul.addr %s518, 8
        %s520 = scalar_lea.vmem %s8, %s519
      $region64: #{variational_encoder_forward.3} parent=59 // pred_fallthru
        _
    $region60: #{variational_encoder_forward.3} parent=5 // pred_fallthru
      _
  $region6: #{variational_encoder_forward.3} parent=0 // loop_footer
    %s18 = sadd.s32 1, %s14
  $region7: #{variational_encoder_forward.3} parent=0 // loop_footer_branch
    %13 = sbr.rel target = $region3
  $region8: #{variational_encoder_forward.3} parent=0 // loop_exit
    _

// kernel: variational_encoder_forward.2
$region0: #{variational_encoder_forward.2}
  #allocation0 [shape = 'u32[]', space=smem, size = 0x4, offset = 0x4, fixed_abs, tag = 'smem constant byte address 0x4 - core index']
  #allocation1 [shape = 'u32[72,128]{1,0:T(1,128)}', space=vmem, size = 0x9000, scoped, tag = 'internal scratch']
  %s0 = inlined_call_operand.vmem [shape: bf16[32,32], index: 0, kind: input, shape index: {}]
  %s1 = inlined_call_operand.vmem [shape: bf16[32,64], index: 1, kind: input, shape index: {}]
  %s2 = inlined_call_operand.vmem [shape: f32[1,64], index: 2, kind: input, shape index: {}]
  %s3 = inlined_call_operand.vmem [shape: f32[32,64], index: 3, kind: output, shape index: {0}]
  %s4 = inlined_call_operand.vmem [shape: f32[2,2,64], index: 4, kind: output, shape index: {1}]
  %5 = xla_tuple %s3, %s4
  %s6 = sld [smem:[#allocation0]]
  $region53: #{variational_encoder_forward.2} parent=0
    _
  %s8 = ssub.s32 1, %s6
  %s9 = scalar_select 0, %s8, %s6
  loop: start=0, step=1, limit=4
  $region2: #{variational_encoder_forward.2} parent=0 // loop_pre_header
    _
  $region3: #{variational_encoder_forward.2} parent=0 // loop_header
    %s11 = sphi 0, %s15
    %p12 = scmp.ge.s32.totalorder %s11, 4
    %s21 = sphi 0, %s23
    %s24 = sphi 0, %s21
    %s25 = sphi 0, %s24
    %s41 = sphi 0, %s25
    %s45 = sphi 0, %s45
    %s47 = sphi 0, %s45
    %s48 = sphi 0, %s47
    %s62 = sphi 0, %s48
    %s66 = sphi 0, %s66
    %s68 = sphi 0, %s66
    %s69 = sphi 0, %s68
    %s83 = sphi 0, %s69
    %s89 = sphi 0, %s91
    %s92 = sphi 0, %s89
    %s93 = sphi 0, %s92
    %s109 = sphi 0, %s93
    %s115 = sphi 0, %s117
    %s118 = sphi 0, %s115
    %s119 = sphi 0, %s118
    %s135 = sphi 0, %s119
  $region4: #{variational_encoder_forward.2} parent=0 // loop_header_branch
    %14 = sbr.rel (%p12) target = $region8
  $region5: #{variational_encoder_forward.2} parent=0 // loop_body
    %s16 = ssub.s32 %s11, 1
    %s17 = ssub.s32 %s11, 2
    %s18 = sadd.s32 %s11, 1
    %s19 = ssub.s32 %s11, %s18
    %p20 = scmp.eq.s32.totalorder %s19, 0
    %s22 = sadd.s32 %s21, 1
    %s23 = scalar_select %p20, %s21, %s22
    %p26 = pneg %p20
    %p27 = scmp.eq.s32.totalorder %s11, 1
    %p28 = por %p26, %p27
    %p29 = scmp.ne.s32.totalorder %s21, %s24
    %p30 = scmp.eq.s32.totalorder %s11, 0
    %p31 = por %p29, %p30
    %p32 = scmp.ne.s32.totalorder %s21, %s24
    %p33 = scmp.eq.s32.totalorder %s16, 1
    %p34 = por %p32, %p33
    %p35 = scmp.ne.s32.totalorder %s24, %s25
    %p36 = scmp.eq.s32.totalorder %s16, 0
    %p37 = por %p35, %p36
    %p38 = scmp.ne.s32.totalorder %s24, %s25
    %p39 = scmp.eq.s32.totalorder %s17, 1
    %p40 = por %p38, %p39
    %p42 = scmp.ne.s32.totalorder %s25, %s41
    %p43 = scmp.eq.s32.totalorder %s17, 0
    %p44 = por %p42, %p43
    %s46 = sadd.s32 %s45, 1
    %p49 = scmp.eq.s32.totalorder %s11, 1
    %p50 = scmp.ne.s32.totalorder %s45, %s47
    %p51 = scmp.eq.s32.totalorder %s11, 0
    %p52 = por %p50, %p51
    %p53 = scmp.ne.s32.totalorder %s45, %s47
    %p54 = scmp.eq.s32.totalorder %s16, 1
    %p55 = por %p53, %p54
    %p56 = scmp.ne.s32.totalorder %s47, %s48
    %p57 = scmp.eq.s32.totalorder %s16, 0
    %p58 = por %p56, %p57
    %p59 = scmp.ne.s32.totalorder %s47, %s48
    %p60 = scmp.eq.s32.totalorder %s17, 1
    %p61 = por %p59, %p60
    %p63 = scmp.ne.s32.totalorder %s48, %s62
    %p64 = scmp.eq.s32.totalorder %s17, 0
    %p65 = por %p63, %p64
    %s67 = sadd.s32 %s66, 1
    %p70 = scmp.eq.s32.totalorder %s11, 1
    %p71 = scmp.ne.s32.totalorder %s66, %s68
    %p72 = scmp.eq.s32.totalorder %s11, 0
    %p73 = por %p71, %p72
    %p74 = scmp.ne.s32.totalorder %s66, %s68
    %p75 = scmp.eq.s32.totalorder %s16, 1
    %p76 = por %p74, %p75
    %p77 = scmp.ne.s32.totalorder %s68, %s69
    %p78 = scmp.eq.s32.totalorder %s16, 0
    %p79 = por %p77, %p78
    %p80 = scmp.ne.s32.totalorder %s68, %s69
    %p81 = scmp.eq.s32.totalorder %s17, 1
    %p82 = por %p80, %p81
    %p84 = scmp.ne.s32.totalorder %s69, %s83
    %p85 = scmp.eq.s32.totalorder %s17, 0
    %p86 = por %p84, %p85
    %s87 = ssub.s32 %s11, %s18
    %p88 = scmp.eq.s32.totalorder %s87, 0
    %s90 = sadd.s32 %s89, 1
    %s91 = scalar_select %p88, %s89, %s90
    %p94 = pneg %p88
    %p95 = scmp.eq.s32.totalorder %s11, 1
    %p96 = por %p94, %p95
    %p97 = scmp.ne.s32.totalorder %s89, %s92
    %p98 = scmp.eq.s32.totalorder %s11, 0
    %p99 = por %p97, %p98
    %p100 = scmp.ne.s32.totalorder %s89, %s92
    %p101 = scmp.eq.s32.totalorder %s16, 1
    %p102 = por %p100, %p101
    %p103 = scmp.ne.s32.totalorder %s92, %s93
    %p104 = scmp.eq.s32.totalorder %s16, 0
    %p105 = por %p103, %p104
    %p106 = scmp.ne.s32.totalorder %s92, %s93
    %p107 = scmp.eq.s32.totalorder %s17, 1
    %p108 = por %p106, %p107
    %p110 = scmp.ne.s32.totalorder %s93, %s109
    %p111 = scmp.eq.s32.totalorder %s17, 0
    %p112 = por %p110, %p111
    %s113 = ssub.s32 %s11, %s18
    %p114 = scmp.eq.s32.totalorder %s113, 0
    %s116 = sadd.s32 %s115, 1
    %s117 = scalar_select %p114, %s115, %s116
    %p120 = pneg %p114
    %p121 = scmp.eq.s32.totalorder %s11, 1
    %p122 = por %p120, %p121
    %p123 = scmp.ne.s32.totalorder %s115, %s118
    %p124 = scmp.eq.s32.totalorder %s11, 0
    %p125 = por %p123, %p124
    %p126 = scmp.ne.s32.totalorder %s115, %s118
    %p127 = scmp.eq.s32.totalorder %s16, 1
    %p128 = por %p126, %p127
    %p129 = scmp.ne.s32.totalorder %s118, %s119
    %p130 = scmp.eq.s32.totalorder %s16, 0
    %p131 = por %p129, %p130
    %p132 = scmp.ne.s32.totalorder %s118, %s119
    %p133 = scmp.eq.s32.totalorder %s17, 1
    %p134 = por %p132, %p133
    %p136 = scmp.ne.s32.totalorder %s119, %s135
    %p137 = scmp.eq.s32.totalorder %s17, 0
    %p138 = por %p136, %p137
    %p139 = scmp.le.s32.totalorder 1, %s11
    %p140 = scmp.lt.s32.totalorder %s11, 3
    %p141 = pnand %p139, %p140
    %p142 = pneg %p141
    // Predicated region
    $region9: #{variational_encoder_forward.2} parent=5 // pred_check
      _
    $region10: #{variational_encoder_forward.2} parent=5 // pred_check_branch
      %144 = sbr.rel (%p141) target = $region12
    $region11: #{variational_encoder_forward.2} parent=5 // pred_region
      %s145 = ssub.s32 %s11, 1
      // Predicated region
      $region13: #{variational_encoder_forward.2} parent=11 // pred_check
        %p146 = pneg %p58
      $region14: #{variational_encoder_forward.2} parent=11 // pred_check_branch
        %148 = sbr.rel (%p146) target = $region16
      $region15: #{variational_encoder_forward.2} parent=11 // pred_region
        _
      $region16: #{variational_encoder_forward.2} parent=11 // pred_fallthru
        _
      // Predicated region
      $region17: #{variational_encoder_forward.2} parent=11 // pred_check
        %p149 = pneg %p79
      $region18: #{variational_encoder_forward.2} parent=11 // pred_check_branch
        %151 = sbr.rel (%p149) target = $region20
      $region19: #{variational_encoder_forward.2} parent=11 // pred_region
        _
      $region20: #{variational_encoder_forward.2} parent=11 // pred_fallthru
        _
    $region12: #{variational_encoder_forward.2} parent=5 // pred_fallthru
      _
    %p152 = scmp.lt.s32.totalorder %s11, 2
    // Predicated region
    $region21: #{variational_encoder_forward.2} parent=5 // pred_check
      %p153 = pneg %p152
    $region22: #{variational_encoder_forward.2} parent=5 // pred_check_branch
      %155 = sbr.rel (%p153) target = $region24
    $region23: #{variational_encoder_forward.2} parent=5 // pred_region
      // Predicated region
      $region25: #{variational_encoder_forward.2} parent=23 // pred_check
        %p156 = pneg %p31
      $region26: #{variational_encoder_forward.2} parent=23 // pred_check_branch
        %158 = sbr.rel (%p156) target = $region28
      $region27: #{variational_encoder_forward.2} parent=23 // pred_region
        %s159 = smul.u32 2, %s11
        %p160 = scmp.lt.s32.totalorder %s159, 3
        %s161 = scalar_select %p160, %s159, 3
        %s162 = smul.addr %s161, 4
        %s163 = scalar_lea.vmem %s0, %s162
        %s164 = smul.u32 2, %s11
      $region28: #{variational_encoder_forward.2} parent=23 // pred_fallthru
        _
    $region24: #{variational_encoder_forward.2} parent=5 // pred_fallthru
      _
    %p165 = scmp.le.s32.totalorder 1, %s11
    %p166 = scmp.lt.s32.totalorder %s11, 3
    %p167 = pnand %p165, %p166
    %p168 = pneg %p167
    // Predicated region
    $region29: #{variational_encoder_forward.2} parent=5 // pred_check
      _
    $region30: #{variational_encoder_forward.2} parent=5 // pred_check_branch
      %170 = sbr.rel (%p167) target = $region32
    $region31: #{variational_encoder_forward.2} parent=5 // pred_region
      %s171 = ssub.s32 %s11, 1
      %s172 = smul.u32 2, %s16
      %p173 = scmp.lt.s32.totalorder %s172, 3
      %s174 = scalar_select %p173, %s172, 3
      %s175 = smul.addr %s174, 4
      %s176 = scalar_lea.vmem %s0, %s175
      %p177 = pneg %p37
      %p178 = pneg %p34
      %p179 = pneg %p58
      %p180 = pneg %p55
      %p181 = pneg %p79
      %p182 = pneg %p76
      %p183 = pneg %p105
      %p184 = pneg %p102
      %s185 = smul.u32 2, %s16
      %p186 = scmp.lt.s32.totalorder %s185, 3
      %s187 = scalar_select %p186, %s185, 3
      %s188 = smul.addr %s187, 8
      %s189 = scalar_lea.vmem %s3, %s188
      %p190 = pneg %p131
      %p191 = pneg %p128
      %p192 = scmp.lt.s32.totalorder %s16, 1
      %s193 = scalar_select %p192, %s16, 1
      %s194 = smul.addr %s193, 2
      %s195 = scalar_lea.vmem %s4, %s194
      %s196 = smul.u32 2, %s16
      %p197 = scmp.lt.s32.totalorder %s196, 3
      %s198 = scalar_select %p197, %s196, 3
      %s199 = smul.addr %s198, 4
      %s200 = scalar_lea.vmem %s0, %s199
      %s201 = smul.u32 2, %s16
      %s202 = smul.u32 2, %s16
      %p203 = scmp.lt.s32.totalorder %s202, 3
      %s204 = scalar_select %p203, %s202, 3
      %s205 = smul.addr %s204, 8
      %s206 = scalar_lea.vmem %s3, %s205
      %s207 = smul.u32 2, %s16
      %p208 = scmp.lt.s32.totalorder %s16, 1
      %s209 = scalar_select %p208, %s16, 1
      %s210 = smul.addr %s209, 2
      %s211 = scalar_lea.vmem %s4, %s210
      %v213 = vld [vmem:[%s200] sm:$0xf]
      %v214 = vld [vmem:[%s200 + $0x4] sm:$0xf]
      %v215 = vld [vmem:[%s1] sm:$0xf]
      %v216 = vld [vmem:[%s1 + $0x4] sm:$0xf]
      %v217 = vld [vmem:[%s1 + $0x8] sm:$0xf]
      %v218 = vld [vmem:[%s1 + $0xc] sm:$0xf]
      %v219 = vld [vmem:[%s2] sm:$0x1]
      %v221 = vperm.slane %v219, 0
      %v225 = vunpack.c.l.b16 %v213
      %v226 = vunpack.c.l.b16 %v214
      %v227 = vpack.c.b16 %v226, %v225
      %v232 = vunpack.c.l.b16 %v215
      %v233 = vunpack.c.l.b16 %v216
      %v234 = vunpack.c.l.b16 %v217
      %v235 = vunpack.c.l.b16 %v218
      %v236 = vpack.c.b16 %v233, %v232
      %v237 = vpack.c.b16 %v235, %v234
      %vm240 = vcmask 261120
      %v242 = vsel %vm240, %v227, 0
      %244 = vmatpush.bf16.msra.mxu0 0
      %245 = vmatpush.bf16.msra.mxu0 0
      %246 = vmatpush.bf16.msra.mxu0 0
      %247 = vmatpush.bf16.msra.mxu0 0
      %248 = vmatpush.bf16.msra.mxu0 0
      %249 = vmatpush.bf16.msra.mxu0 0
      %250 = vmatpush.bf16.msra.mxu0 %v237
      %251 = vmatpush.bf16.msra.mxu0 %v236
      %252 = vmatmul.bf16.gmra.mxu0 %v242
      %v253 = vpop.f32.mrf.mxu0
      %v254 = vadd.f32 %v221, %v253
      %v255 = vpop.f32.mrf.mxu0
      %v256 = vadd.f32 %v221, %v255
      %257 = vdwg.mxu0
      %vm258 = vcmask 523264
      %259 = vst.msk [vmem:[%s206] sm:$0xff] %vm258, %v254
      %260 = vst.msk [vmem:[%s206 + $0x8] sm:$0xff] %vm258, %v256
      %v261 = vsel %vm258, %v254, 0.0
      %v262 = vsel %vm258, %v256, 0.0
      %v263 = vadd.f32 %v261, %v262
      %v264 = vrot.slane %v263, 4
      %v265 = vadd.f32 %v263, %v264
      %v266 = vrot.slane %v265, 2
      %v267 = vadd.f32 %v265, %v266
      %v268 = vrot.slane %v267, 1
      %v269 = vadd.f32 %v267, %v268
      %v270 = vmul.f32 %v254, %v254
      %v271 = vmul.f32 %v256, %v256
      %v272 = vsel %vm258, %v270, 0.0
      %v273 = vsel %vm258, %v271, 0.0
      %v274 = vadd.f32 %v272, %v273
      %v275 = vrot.slane %v274, 4
      %v276 = vadd.f32 %v274, %v275
      %v277 = vrot.slane %v276, 2
      %v278 = vadd.f32 %v276, %v277
      %v279 = vrot.slane %v278, 1
      %v280 = vadd.f32 %v278, %v279
      %vm281 = vcmask 1040384
      %v282 = vsel %vm281, %v269, %v280
      %vm283 = vcmask 517120
      %284 = vst.msk [vmem:[%s211] sm:$0x3] %vm283, %v282
      %s285 = smul.u32 2, %s16
      %p286 = scmp.lt.s32.totalorder %s285, 3
      %s287 = scalar_select %p286, %s285, 3
      %s288 = smul.addr %s287, 8
      %s289 = scalar_lea.vmem %s3, %s288
      %p290 = scmp.lt.s32.totalorder %s16, 1
      %s291 = scalar_select %p290, %s16, 1
      %s292 = smul.addr %s291, 2
      %s293 = scalar_lea.vmem %s4, %s292
      // Predicated region
      $region33: #{variational_encoder_forward.2} parent=31 // pred_check
        %p294 = pneg %p102
      $region34: #{variational_encoder_forward.2} parent=31 // pred_check_branch
        %296 = sbr.rel (%p294) target = $region36
      $region35: #{variational_encoder_forward.2} parent=31 // pred_region
        %s297 = smul.u32 2, %s16
      $region36: #{variational_encoder_forward.2} parent=31 // pred_fallthru
        _
      // Predicated region
      $region37: #{variational_encoder_forward.2} parent=31 // pred_check
        %p298 = pneg %p128
      $region38: #{variational_encoder_forward.2} parent=31 // pred_check_branch
        %300 = sbr.rel (%p298) target = $region40
      $region39: #{variational_encoder_forward.2} parent=31 // pred_region
        _
      $region40: #{variational_encoder_forward.2} parent=31 // pred_fallthru
        _
    $region32: #{variational_encoder_forward.2} parent=5 // pred_fallthru
      _
    %p301 = scmp.le.s32.totalorder 2, %s11
    // Predicated region
    $region41: #{variational_encoder_forward.2} parent=5 // pred_check
      %p302 = pneg %p301
    $region42: #{variational_encoder_forward.2} parent=5 // pred_check_branch
      %304 = sbr.rel (%p302) target = $region44
    $region43: #{variational_encoder_forward.2} parent=5 // pred_region
      %s305 = ssub.s32 %s11, 2
      // Predicated region
      $region45: #{variational_encoder_forward.2} parent=43 // pred_check
        %p306 = pneg %p108
      $region46: #{variational_encoder_forward.2} parent=43 // pred_check_branch
        %308 = sbr.rel (%p306) target = $region48
      $region47: #{variational_encoder_forward.2} parent=43 // pred_region
        %s309 = smul.u32 2, %s17
        %p310 = scmp.lt.s32.totalorder %s309, 3
        %s311 = scalar_select %p310, %s309, 3
        %s312 = smul.addr %s311, 8
        %s313 = scalar_lea.vmem %s3, %s312
      $region48: #{variational_encoder_forward.2} parent=43 // pred_fallthru
        _
      // Predicated region
      $region49: #{variational_encoder_forward.2} parent=43 // pred_check
        %p314 = pneg %p134
      $region50: #{variational_encoder_forward.2} parent=43 // pred_check_branch
        %316 = sbr.rel (%p314) target = $region52
      $region51: #{variational_encoder_forward.2} parent=43 // pred_region
        %p317 = scmp.lt.s32.totalorder %s17, 1
        %s318 = scalar_select %p317, %s17, 1
        %s319 = smul.addr %s318, 2
        %s320 = scalar_lea.vmem %s4, %s319
      $region52: #{variational_encoder_forward.2} parent=43 // pred_fallthru
        _
    $region44: #{variational_encoder_forward.2} parent=5 // pred_fallthru
      _
  $region6: #{variational_encoder_forward.2} parent=0 // loop_footer
    %s15 = sadd.s32 1, %s11
  $region7: #{variational_encoder_forward.2} parent=0 // loop_footer_branch
    %10 = sbr.rel target = $region3
  $region8: #{variational_encoder_forward.2} parent=0 // loop_exit
    _

</llo_original>
